<compile_context>
chip_gen: v6e
topology: v6e:2x2x1
jax: 0.10.0
libtpu: 0.0.40
codegen_flags: <defaults>
</compile_context>

<pallas_src>
import numpy as np
import jax
import jax.numpy as jnp
from jax.experimental import pallas as pl
from jax.experimental.pallas import tpu as pltpu


# -----------------------------------------------------------------------------
# Kernel: fused row pool (VPU) + column pool / de-interleave (small MXU matmul)
# -----------------------------------------------------------------------------
def _chroma_kernel(x_ref, p_ref, cb_ref, cr_ref):
    """One grid step: TH2 pooled output rows, all W pixel columns.

    x_ref : (1, TH2, 6*W) f32  -- row-pair r -> [row 2r interleaved | row 2r+1 interleaved]
    p_ref : (3*TWC, TWC) bf16  -- column-pool + Cb/Cr de-interleave matrix (fetched once)
    cb_ref, cr_ref : (1, TH2, W//2) f32
    """
    three_w = x_ref.shape[2] // 2
    k = p_ref.shape[0]            # 3 * TWC
    twc = p_ref.shape[1]
    half = twc // 2
    n_chunks = three_w // k
    p = p_ref[...]

    for ci in range(n_chunks):    # static, unrolled at trace time
        off = k * ci
        a = x_ref[0, :, off:off + k]                          # even image row chunk
        c = x_ref[0, :, three_w + off:three_w + off + k]      # odd image row chunk
        rs = a + c                                            # exact f32 row pool (VPU)

        # 3-term bf16 split -> three single-pass MXU matmuls, ~f32-exact result
        # (P entries are 0 / 0.25, exact in bf16; accumulation in f32).
        h1 = rs.astype(jnp.bfloat16)
        r1 = rs - h1.astype(jnp.float32)
        h2 = r1.astype(jnp.bfloat16)
        h3 = (r1 - h2.astype(jnp.float32)).astype(jnp.bfloat16)
        pooled = (jnp.dot(h1, p, preferred_element_type=jnp.float32)
                  + jnp.dot(h2, p, preferred_element_type=jnp.float32)
                  + jnp.dot(h3, p, preferred_element_type=jnp.float32))

        cb_ref[0, :, half * ci:half * (ci + 1)] = pooled[:, :half]
        cr_ref[0, :, half * ci:half * (ci + 1)] = pooled[:, half:]


# -----------------------------------------------------------------------------
# Tiling helpers
# -----------------------------------------------------------------------------
def _pick_col_chunk(w):
    """Pixel columns per in-kernel matmul chunk (keeps P small, output lane-dense)."""
    if w % 256 == 0:
        return 256
    for cand in range(min(w, 512), 0, -2):     # even candidates only (w is even)
        if w % cand == 0:
            return cand if cand >= 16 else w
    return w


def _pick_row_tile(h2, w, batch):
    """Pooled output rows per grid step: divides h2, multiple of 8 (or full extent),
    targets ~4 MiB of input per step and >=2 total grid steps when possible."""
    if h2 % 8 != 0:
        return h2                              # full-extent block is always legal
    lane_bytes = 6 * w * 4
    target_rows = max(8, (4 * 1024 * 1024) // lane_bytes)
    t = max(8, min(h2, (target_rows // 8) * 8))
    while t > 8 and h2 % t != 0:
        t -= 8
    if h2 % t != 0:
        t = h2
    # Keep both v7x TensorCores busy: split if the grid would have only 1 step.
    if batch * (h2 // t) < 2 and h2 >= 16 and (h2 // 2) % 8 == 0:
        t = h2 // 2
    return t


def _pool_matrix(twc):
    """(3*TWC, TWC) constant: cols [0, TWC/2) -> Cb, [TWC/2, TWC) -> Cr.
    Folds the 2x column pool, the 1/4, and the channel de-interleave."""
    p = np.zeros((3 * twc, twc), np.float32)
    j = np.arange(twc // 2)
    p[6 * j + 1, j] = 0.25
    p[6 * j + 4, j] = 0.25
    p[6 * j + 2, twc // 2 + j] = 0.25
    p[6 * j + 5, twc // 2 + j] = 0.25
    return p


# -----------------------------------------------------------------------------
# Wrapper
# -----------------------------------------------------------------------------
def chroma_subsampling(image):
    """image: (B, H, W, 3) -> (y (B,H,W), cb (B,H/2,W/2), cr (B,H/2,W/2)), f32."""
    b, h, w, c = image.shape
    assert c == 3, "expected channel-last input with 3 channels"
    assert h % 2 == 0 and w % 2 == 0, "H and W must be even for 2x2 pooling"
    image = image.astype(jnp.float32)

    # Exact Y passthrough (the reference returns the raw channel).
    y = image[..., 0]

    # Free reshape: each row holds an (even, odd) image-row pair, interleaved.
    h2 = h // 2
    img2 = image.reshape(b, h2, 6 * w)

    twc = _pick_col_chunk(w)
    th2 = _pick_row_tile(h2, w, b)
    p = jnp.asarray(_pool_matrix(twc), dtype=jnp.bfloat16)

    grid = (b, h2 // th2)
    n_steps = b * (h2 // th2)
    n_chunks = w // twc
    flops = int(n_steps * n_chunks * 3 * 2 * th2 * (3 * twc) * twc)
    bytes_accessed = int(4 * (b * h2 * 6 * w + 2 * b * h2 * (w // 2)))

    cb, cr = pl.pallas_call(
        _chroma_kernel,
        out_shape=(
            jax.ShapeDtypeStruct((b, h2, w // 2), jnp.float32),
            jax.ShapeDtypeStruct((b, h2, w // 2), jnp.float32),
        ),
        grid=grid,
        in_specs=[
            pl.BlockSpec((1, th2, 6 * w), lambda bi, ri: (bi, ri, 0)),
            pl.BlockSpec((3 * twc, twc), lambda bi, ri: (0, 0)),   # constant block -> fetched once
        ],
        out_specs=(
            pl.BlockSpec((1, th2, w // 2), lambda bi, ri: (bi, ri, 0)),
            pl.BlockSpec((1, th2, w // 2), lambda bi, ri: (bi, ri, 0)),
        ),
        compiler_params=pltpu.CompilerParams(
            dimension_semantics=("parallel", "parallel"),
            vmem_limit_bytes=32 * 1024 * 1024),
        cost_estimate=pl.CostEstimate(
            flops=flops, transcendentals=0, bytes_accessed=bytes_accessed),
    )(img2, p)
    return y, cb, cr


# -----------------------------------------------------------------------------
# Pure numpy reference (mirrors the torch module).
# -----------------------------------------------------------------------------
def _reference(image):
    img = np.asarray(image, np.float64)
    y = img[:, :, :, 0]

    def pool(plane):
        return 0.25 * (plane[:, 0::2, 0::2] + plane[:, 0::2, 1::2]
                       + plane[:, 1::2, 0::2] + plane[:, 1::2, 1::2])

    return y, pool(img[..., 1]), pool(img[..., 2])


if __name__ == "__main__":
    def check(key, shape):
        image = jax.random.uniform(key, shape, jnp.float32) * 255.0
        y, cb, cr = chroma_subsampling(image)
        jax.block_until_ready((y, cb, cr))
        bb, hh, ww, _ = shape
        assert y.shape == (bb, hh, ww)
        assert cb.shape == (bb, hh // 2, ww // 2) and cr.shape == cb.shape
        y_exp, cb_exp, cr_exp = _reference(image)
        np.testing.assert_array_equal(np.asarray(y), y_exp.astype(np.float32))
        np.testing.assert_allclose(np.asarray(cb), cb_exp, rtol=1e-5, atol=1e-3)
        np.testing.assert_allclose(np.asarray(cr), cr_exp, rtol=1e-5, atol=1e-3)

    # Small shape (full-extent blocks, single column chunk).
    check(jax.random.PRNGKey(0), (2, 16, 16, 3))
    # Larger shape: row-tiled grid (2 steps for B=1) + 4 column chunks.
    check(jax.random.PRNGKey(1), (1, 512, 1024, 3))
    # Width not a multiple of 256 (single 192-pixel chunk, row-split grid).
    check(jax.random.PRNGKey(2), (1, 64, 192, 3))

    print("KERNEL_OK")
</pallas_src>

<mosaic_0001>
module attributes {stable_mosaic.version = 11 : i64} {
  func.func @_chroma_kernel(%arg0: i32, %arg1: i32, %arg2: memref<1x8x96xf32, #tpu.memory_space<vmem>>, %arg3: memref<48x16xbf16, #tpu.memory_space<vmem>>, %arg4: memref<1x8x8xf32, #tpu.memory_space<vmem>>, %arg5: memref<1x8x8xf32, #tpu.memory_space<vmem>>) attributes {dimension_semantics = [#tpu.dimension_semantics<parallel>, #tpu.dimension_semantics<parallel>], iteration_bounds = array<i64: 2, 1>, scalar_prefetch = 0 : i64, scratch_operands = 0 : i64, tpu.core_type = #tpu.core_type<tc>, window_params = [{transform_indices = @transform_0, window_bounds = array<i64: 1, 8, 96>}, {pipeline_mode = #tpu.pipeline_mode<synchronous>, transform_indices = @transform_1, window_bounds = array<i64: 48, 16>}, {transform_indices = @transform_2, window_bounds = array<i64: 1, 8, 8>}, {transform_indices = @transform_3, window_bounds = array<i64: 1, 8, 8>}]} {
    %c0 = arith.constant 0 : index
    %c0_0 = arith.constant 0 : index
    %0 = vector.load %arg3[%c0, %c0_0] : memref<48x16xbf16, #tpu.memory_space<vmem>>, vector<48x16xbf16>
    %c0_1 = arith.constant 0 : index
    %c0_2 = arith.constant 0 : index
    %c0_3 = arith.constant 0 : index
    %1 = vector.load %arg2[%c0_1, %c0_2, %c0_3] : memref<1x8x96xf32, #tpu.memory_space<vmem>>, vector<1x8x48xf32>
    %2 = vector.shape_cast %1 : vector<1x8x48xf32> to vector<8x48xf32>
    %c0_4 = arith.constant 0 : index
    %c0_5 = arith.constant 0 : index
    %c48 = arith.constant 48 : index
    %3 = vector.load %arg2[%c0_4, %c0_5, %c48] : memref<1x8x96xf32, #tpu.memory_space<vmem>>, vector<1x8x48xf32>
    %4 = vector.shape_cast %3 : vector<1x8x48xf32> to vector<8x48xf32>
    %5 = arith.addf %2, %4 : vector<8x48xf32>
    %6 = arith.truncf %5 : vector<8x48xf32> to vector<8x48xbf16>
    %7 = arith.extf %6 : vector<8x48xbf16> to vector<8x48xf32>
    %8 = arith.subf %5, %7 : vector<8x48xf32>
    %9 = arith.truncf %8 : vector<8x48xf32> to vector<8x48xbf16>
    %10 = arith.extf %9 : vector<8x48xbf16> to vector<8x48xf32>
    %11 = arith.subf %8, %10 : vector<8x48xf32>
    %12 = arith.truncf %11 : vector<8x48xf32> to vector<8x48xbf16>
    %cst = arith.constant dense<0.000000e+00> : vector<8x16xf32>
    %13 = tpu.matmul %6, %0, %cst {dimension_numbers = #tpu.dot_dimension_numbers<[1], [0], [0], [1], [0, 0, 1, 1], [], []>} : vector<8x48xbf16>, vector<48x16xbf16>, vector<8x16xf32> -> vector<8x16xf32>
    %cst_6 = arith.constant dense<0.000000e+00> : vector<8x16xf32>
    %14 = tpu.matmul %9, %0, %cst_6 {dimension_numbers = #tpu.dot_dimension_numbers<[1], [0], [0], [1], [0, 0, 1, 1], [], []>} : vector<8x48xbf16>, vector<48x16xbf16>, vector<8x16xf32> -> vector<8x16xf32>
    %15 = arith.addf %13, %14 : vector<8x16xf32>
    %cst_7 = arith.constant dense<0.000000e+00> : vector<8x16xf32>
    %16 = tpu.matmul %12, %0, %cst_7 {dimension_numbers = #tpu.dot_dimension_numbers<[1], [0], [0], [1], [0, 0, 1, 1], [], []>} : vector<8x48xbf16>, vector<48x16xbf16>, vector<8x16xf32> -> vector<8x16xf32>
    %17 = arith.addf %15, %16 : vector<8x16xf32>
    %18 = vector.extract_strided_slice %17 {offsets = [0, 0], sizes = [8, 8], strides = [1, 1]} : vector<8x16xf32> to vector<8x8xf32>
    %c0_8 = arith.constant 0 : index
    %c0_9 = arith.constant 0 : index
    %c0_10 = arith.constant 0 : index
    %19 = vector.load %arg4[%c0_8, %c0_9, %c0_10] : memref<1x8x8xf32, #tpu.memory_space<vmem>>, vector<1x8x8xf32>
    %20 = vector.shape_cast %19 : vector<1x8x8xf32> to vector<8x8xf32>
    %21 = vector.shape_cast %18 : vector<8x8xf32> to vector<1x8x8xf32>
    tpu.vector_store %arg4[%c0_8, %c0_9, %c0_10], %21 {strides = array<i32>} : memref<1x8x8xf32, #tpu.memory_space<vmem>>, vector<1x8x8xf32>,
    %22 = vector.extract_strided_slice %17 {offsets = [0, 8], sizes = [8, 8], strides = [1, 1]} : vector<8x16xf32> to vector<8x8xf32>
    %c0_11 = arith.constant 0 : index
    %c0_12 = arith.constant 0 : index
    %c0_13 = arith.constant 0 : index
    %23 = vector.load %arg5[%c0_11, %c0_12, %c0_13] : memref<1x8x8xf32, #tpu.memory_space<vmem>>, vector<1x8x8xf32>
    %24 = vector.shape_cast %23 : vector<1x8x8xf32> to vector<8x8xf32>
    %25 = vector.shape_cast %22 : vector<8x8xf32> to vector<1x8x8xf32>
    tpu.vector_store %arg5[%c0_11, %c0_12, %c0_13], %25 {strides = array<i32>} : memref<1x8x8xf32, #tpu.memory_space<vmem>>, vector<1x8x8xf32>,
    return
  }
  func.func @transform_0(%arg0: i32, %arg1: i32) -> (i32, i32, i32) {
    %c0_i32 = arith.constant 0 : i32
    %c0_i32_0 = arith.constant 0 : i32
    return %arg0, %arg1, %c0_i32 : i32, i32, i32
  }
  func.func @transform_1(%arg0: i32, %arg1: i32) -> (i32, i32) {
    %c0_i32 = arith.constant 0 : i32
    %c0_i32_0 = arith.constant 0 : i32
    %c0_i32_1 = arith.constant 0 : i32
    return %c0_i32, %c0_i32_0 : i32, i32
  }
  func.func @transform_2(%arg0: i32, %arg1: i32) -> (i32, i32, i32) {
    %c0_i32 = arith.constant 0 : i32
    %c0_i32_0 = arith.constant 0 : i32
    return %arg0, %arg1, %c0_i32 : i32, i32, i32
  }
  func.func @transform_3(%arg0: i32, %arg1: i32) -> (i32, i32, i32) {
    %c0_i32 = arith.constant 0 : i32
    %c0_i32_0 = arith.constant 0 : i32
    return %arg0, %arg1, %c0_i32 : i32, i32, i32
  }
}

</mosaic_0001>

<llo_original>
// kernel: tpu_custom_call.1
$region0: #{tpu_custom_call.1}
  #allocation0 [shape = 'u32[]', space=smem, size = 0x4, offset = 0x4, fixed_abs, tag = 'smem constant byte address 0x4 - core index']
  #allocation1 [shape = 'u32[144,128]{1,0:T(1,128)}', space=vmem, size = 0x12000, scoped, tag = 'internal scratch']
  %s0 = inlined_call_operand.vmem [shape: f32[2,8,96], index: 0, kind: input, shape index: {}]
  %s1 = inlined_call_operand.vmem [shape: bf16[48,16], index: 1, kind: input, shape index: {}]
  %s2 = inlined_call_operand.hbm [shape: f32[2,8,8], index: 2, kind: output, shape index: {0}]
  %s3 = inlined_call_operand.hbm [shape: f32[2,8,8], index: 3, kind: output, shape index: {1}]
  %4 = xla_tuple %s2, %s3
  %s5 = sld [smem:[#allocation0]]
  $region49: #{tpu_custom_call.1} parent=0
    _
  %s7 = ssub.s32 1, %s5
  %s8 = scalar_select 0, %s7, %s5
  $region1: #{tpu_custom_call.1} parent=0
    #allocation2 [shape = 'u8[8192]{0}', space=vmem, size = 0x2000, scoped, tag = 'output window, operand 0']
    #allocation3 [shape = 's32[2]{0}', space=sflag, size = 0x8, scoped, tag = 'scoped memory for tpu_custom_call.1']
    #allocation4 [shape = 'u8[8192]{0}', space=vmem, size = 0x2000, scoped, tag = 'output window, operand 1']
    #allocation5 [shape = 's32[2]{0}', space=sflag, size = 0x8, scoped, tag = 'scoped memory for tpu_custom_call.1']
    %9 = vsyncpa [#allocation3], 0
    %s10 = scalar_lea.sflag [#allocation3], 1
    %11 = vsyncpa %s10, 0
    %12 = vsyncpa [#allocation5], 0
    %s13 = scalar_lea.sflag [#allocation5], 1
    %14 = vsyncpa %s13, 0
    loop: start=0, step=1, limit=4
    $region2: #{tpu_custom_call.1} parent=1 // loop_pre_header
      _
    $region3: #{tpu_custom_call.1} parent=1 // loop_header
      %s16 = sphi 0, %s20
      %p17 = scmp.ge.s32.totalorder %s16, 4
      %s23 = sphi 0, %s35
      %s24 = sphi 0, %s31
      %s25 = sphi 0, %s23
      %s26 = sphi 0, %s24
      %s27 = sphi 0, %s25
      %s28 = sphi 0, %s26
      %s40 = sphi 0, %s42
      %s43 = sphi 0, %s40
      %s44 = sphi 0, %s43
      %s60 = sphi 0, %s44
      %s64 = sphi 0, %s64
      %s66 = sphi 0, %s64
      %s67 = sphi 0, %s66
      %s81 = sphi 0, %s67
      %s89 = sphi 0, %s91
      %s92 = sphi 0, %s89
      %s93 = sphi 0, %s92
      %s109 = sphi 0, %s93
      %s117 = sphi 0, %s119
      %s120 = sphi 0, %s117
      %s121 = sphi 0, %s120
      %s137 = sphi 0, %s121
    $region4: #{tpu_custom_call.1} parent=1 // loop_header_branch
      %19 = sbr.rel (%p17) target = $region8
    $region5: #{tpu_custom_call.1} parent=1 // loop_body
      %s21 = ssub.s32 %s16, 1
      %s22 = ssub.s32 %s16, 2
      %s29 = sadd.s32 1, %s24
      %p30 = scmp.ge.s32.totalorder %s29, 1
      %s31 = scalar_select %p30, 0, %s29
      %s32 = sadd.s32 1, %s23
      %s33 = scalar_select %p30, %s32, %s23
      %p34 = scmp.ge.s32.totalorder %s33, 2
      %s35 = scalar_select %p34, 0, %s33
      %s36 = ssub.s32 %s23, %s35
      %s37 = ssub.s32 %s24, %s31
      %s38 = sor.u32 %s36, %s37
      %p39 = scmp.eq.s32.totalorder %s38, 0
      %s41 = sadd.s32 %s40, 1
      %s42 = scalar_select %p39, %s40, %s41
      %p45 = pneg %p39
      %p46 = scmp.eq.s32.totalorder %s16, 1
      %p47 = por %p45, %p46
      %p48 = scmp.ne.s32.totalorder %s40, %s43
      %p49 = scmp.eq.s32.totalorder %s16, 0
      %p50 = por %p48, %p49
      %p51 = scmp.ne.s32.totalorder %s40, %s43
      %p52 = scmp.eq.s32.totalorder %s21, 1
      %p53 = por %p51, %p52
      %p54 = scmp.ne.s32.totalorder %s43, %s44
      %p55 = scmp.eq.s32.totalorder %s21, 0
      %p56 = por %p54, %p55
      %p57 = scmp.ne.s32.totalorder %s43, %s44
      %p58 = scmp.eq.s32.totalorder %s22, 1
      %p59 = por %p57, %p58
      %p61 = scmp.ne.s32.totalorder %s44, %s60
      %p62 = scmp.eq.s32.totalorder %s22, 0
      %p63 = por %p61, %p62
      %s65 = sadd.s32 %s64, 1
      %p68 = scmp.eq.s32.totalorder %s16, 1
      %p69 = scmp.ne.s32.totalorder %s64, %s66
      %p70 = scmp.eq.s32.totalorder %s16, 0
      %p71 = por %p69, %p70
      %p72 = scmp.ne.s32.totalorder %s64, %s66
      %p73 = scmp.eq.s32.totalorder %s21, 1
      %p74 = por %p72, %p73
      %p75 = scmp.ne.s32.totalorder %s66, %s67
      %p76 = scmp.eq.s32.totalorder %s21, 0
      %p77 = por %p75, %p76
      %p78 = scmp.ne.s32.totalorder %s66, %s67
      %p79 = scmp.eq.s32.totalorder %s22, 1
      %p80 = por %p78, %p79
      %p82 = scmp.ne.s32.totalorder %s67, %s81
      %p83 = scmp.eq.s32.totalorder %s22, 0
      %p84 = por %p82, %p83
      %s85 = ssub.s32 %s23, %s35
      %s86 = ssub.s32 %s24, %s31
      %s87 = sor.u32 %s85, %s86
      %p88 = scmp.eq.s32.totalorder %s87, 0
      %s90 = sadd.s32 %s89, 1
      %s91 = scalar_select %p88, %s89, %s90
      %p94 = pneg %p88
      %p95 = scmp.eq.s32.totalorder %s16, 1
      %p96 = por %p94, %p95
      %p97 = scmp.ne.s32.totalorder %s89, %s92
      %p98 = scmp.eq.s32.totalorder %s16, 0
      %p99 = por %p97, %p98
      %p100 = scmp.ne.s32.totalorder %s89, %s92
      %p101 = scmp.eq.s32.totalorder %s21, 1
      %p102 = por %p100, %p101
      %p103 = scmp.ne.s32.totalorder %s92, %s93
      %p104 = scmp.eq.s32.totalorder %s21, 0
      %p105 = por %p103, %p104
      %p106 = scmp.ne.s32.totalorder %s92, %s93
      %p107 = scmp.eq.s32.totalorder %s22, 1
      %p108 = por %p106, %p107
      %p110 = scmp.ne.s32.totalorder %s93, %s109
      %p111 = scmp.eq.s32.totalorder %s22, 0
      %p112 = por %p110, %p111
      %s113 = ssub.s32 %s23, %s35
      %s114 = ssub.s32 %s24, %s31
      %s115 = sor.u32 %s113, %s114
      %p116 = scmp.eq.s32.totalorder %s115, 0
      %s118 = sadd.s32 %s117, 1
      %s119 = scalar_select %p116, %s117, %s118
      %p122 = pneg %p116
      %p123 = scmp.eq.s32.totalorder %s16, 1
      %p124 = por %p122, %p123
      %p125 = scmp.ne.s32.totalorder %s117, %s120
      %p126 = scmp.eq.s32.totalorder %s16, 0
      %p127 = por %p125, %p126
      %p128 = scmp.ne.s32.totalorder %s117, %s120
      %p129 = scmp.eq.s32.totalorder %s21, 1
      %p130 = por %p128, %p129
      %p131 = scmp.ne.s32.totalorder %s120, %s121
      %p132 = scmp.eq.s32.totalorder %s21, 0
      %p133 = por %p131, %p132
      %p134 = scmp.ne.s32.totalorder %s120, %s121
      %p135 = scmp.eq.s32.totalorder %s22, 1
      %p136 = por %p134, %p135
      %p138 = scmp.ne.s32.totalorder %s121, %s137
      %p139 = scmp.eq.s32.totalorder %s22, 0
      %p140 = por %p138, %p139
      %p141 = scmp.le.s32.totalorder 1, %s16
      %p142 = scmp.lt.s32.totalorder %s16, 3
      %p143 = pnand %p141, %p142
      %p144 = pneg %p143
      // Predicated region
      $region9: #{tpu_custom_call.1} parent=5 // pred_check
        _
      $region10: #{tpu_custom_call.1} parent=5 // pred_check_branch
        %146 = sbr.rel (%p143) target = $region12
      $region11: #{tpu_custom_call.1} parent=5 // pred_region
        %s147 = ssub.s32 %s16, 1
        // Predicated region
        $region13: #{tpu_custom_call.1} parent=11 // pred_check
          %p148 = pneg %p77
        $region14: #{tpu_custom_call.1} parent=11 // pred_check_branch
          %150 = sbr.rel (%p148) target = $region16
        $region15: #{tpu_custom_call.1} parent=11 // pred_region
          _
        $region16: #{tpu_custom_call.1} parent=11 // pred_fallthru
          _
      $region12: #{tpu_custom_call.1} parent=5 // pred_fallthru
        _
      %p151 = scmp.lt.s32.totalorder %s16, 2
      // Predicated region
      $region17: #{tpu_custom_call.1} parent=5 // pred_check
        %p152 = pneg %p151
      $region18: #{tpu_custom_call.1} parent=5 // pred_check_branch
        %154 = sbr.rel (%p152) target = $region20
      $region19: #{tpu_custom_call.1} parent=5 // pred_region
        // Predicated region
        $region21: #{tpu_custom_call.1} parent=19 // pred_check
          %p155 = pneg %p50
        $region22: #{tpu_custom_call.1} parent=19 // pred_check_branch
          %157 = sbr.rel (%p155) target = $region24
        $region23: #{tpu_custom_call.1} parent=19 // pred_region
          %p158 = scmp.lt.s32.totalorder %s23, 1
          %s159 = scalar_select %p158, %s23, 1
          %p160 = scmp.lt.s32.totalorder %s24, 0
          %s161 = scalar_select %p160, %s24, 0
          %s162 = sadd.s32 %s161, %s159
          %s163 = smul.addr %s162, 8
          %s164 = scalar_lea.vmem %s0, %s163
        $region24: #{tpu_custom_call.1} parent=19 // pred_fallthru
          _
      $region20: #{tpu_custom_call.1} parent=5 // pred_fallthru
        _
      %p165 = scmp.le.s32.totalorder 1, %s16
      %p166 = scmp.lt.s32.totalorder %s16, 3
      %p167 = pnand %p165, %p166
      %p168 = pneg %p167
      // Predicated region
      $region25: #{tpu_custom_call.1} parent=5 // pred_check
        _
      $region26: #{tpu_custom_call.1} parent=5 // pred_check_branch
        %170 = sbr.rel (%p167) target = $region28
      $region27: #{tpu_custom_call.1} parent=5 // pred_region
        %s171 = ssub.s32 %s16, 1
        %p172 = scmp.lt.s32.totalorder %s25, 1
        %s173 = scalar_select %p172, %s25, 1
        %p174 = scmp.lt.s32.totalorder %s26, 0
        %s175 = scalar_select %p174, %s26, 0
        %s176 = sadd.s32 %s175, %s173
        %s177 = smul.addr %s176, 8
        %s178 = scalar_lea.vmem %s0, %s177
        %p179 = pneg %p56
        %p180 = pneg %p53
        %p181 = pneg %p77
        %p182 = pneg %p74
        %p183 = pneg %p105
        %p184 = pneg %p102
        %s185 = sand.u32 %s92, 1
        %s186 = scalar_lea.sflag [#allocation3], %s185
        %s187 = sand.u32 %s92, 1
        %s188 = smul.addr %s187, 8
        %s189 = scalar_lea.vmem [#allocation2], %s188
        %p190 = pneg %p133
        %p191 = pneg %p130
        %s192 = sand.u32 %s120, 1
        %s193 = scalar_lea.sflag [#allocation5], %s192
        %s194 = sand.u32 %s120, 1
        %s195 = smul.addr %s194, 8
        %s196 = scalar_lea.vmem [#allocation4], %s195
        %p197 = scmp.lt.s32.totalorder %s25, 1
        %s198 = scalar_select %p197, %s25, 1
        %p199 = scmp.lt.s32.totalorder %s26, 0
        %s200 = scalar_select %p199, %s26, 0
        %s201 = sadd.s32 %s200, %s198
        %s202 = smul.addr %s201, 8
        %s203 = scalar_lea.vmem %s0, %s202
        %v205 = vld [vmem:[%s1] sm:$0xf]
        %v206 = vld [vmem:[%s1 + $0x4] sm:$0xf]
        %v207 = vld [vmem:[%s1 + $0x8] sm:$0xf]
        %v208 = vld [vmem:[%s1 + $0xc] sm:$0xf]
        %v209 = vld [vmem:[%s1 + $0x10] sm:$0xf]
        %v210 = vld [vmem:[%s1 + $0x14] sm:$0xf]
        %v211 = vld [vmem:[%s203] sm:$0xff]
        %213 = vrot.lane.b32.xlu0 %v211, 80
        %v214 = vpop.permute.xlu0 %213
        %v216 = vadd.f32 %v211, %v214
        %v217 = vpack.c.bf16 %v216, %v216
        %v218 = vunpack.c.l.bf16 %v217
        %v219 = vsub.f32 %v216, %v218
        %v220 = vpack.c.bf16 %v219, %v219
        %v221 = vunpack.c.l.bf16 %v220
        %v222 = vsub.f32 %v219, %v221
        %v223 = vpack.c.bf16 %v222, %v222
        %v230 = vunpack.c.l.b16 %v205
        %v231 = vunpack.c.l.b16 %v206
        %v232 = vunpack.c.l.b16 %v207
        %v233 = vunpack.c.l.b16 %v208
        %v234 = vunpack.c.l.b16 %v209
        %v235 = vunpack.c.l.b16 %v210
        %v236 = vpack.c.b16 %v231, %v230
        %v237 = vpack.c.b16 %v233, %v232
        %v238 = vpack.c.b16 %v235, %v234
        %vm242 = vcmask 392192
        %v244 = vsel %vm242, %v220, 0
        %246 = vmatprep.subr.bf16.mxu0 0
        %247 = vmatpush1.bf16.msra.mxu0 0
        %248 = vmatprep.subr.bf16.mxu0 0
        %249 = vmatpush1.bf16.msra.mxu0 0
        %250 = vmatprep.subr.bf16.mxu0 0
        %251 = vmatpush1.bf16.msra.mxu0 0
        %252 = vmatprep.subr.bf16.mxu0 0
        %253 = vmatpush1.bf16.msra.mxu0 0
        %254 = vmatprep.subr.bf16.mxu0 0
        %255 = vmatpush1.bf16.msra.mxu0 0
        %256 = vmatprep.subr.bf16.mxu0 0
        %257 = vmatpush1.bf16.msra.mxu0 %v238
        %258 = vmatprep.subr.bf16.mxu0 0
        %259 = vmatpush1.bf16.msra.mxu0 %v237
        %260 = vmatprep.subr.bf16.mxu0 0
        %261 = vmatpush1.bf16.msra.mxu0 %v236
        %262 = vmatprep.subr.bf16.mxu0 0
        %263 = vmatpush2.bf16.msra.mxu0 0
        %264 = vmatprep.subr.bf16.mxu0 0
        %265 = vmatpush2.bf16.msra.mxu0 0
        %266 = vmatprep.subr.bf16.mxu0 0
        %267 = vmatpush2.bf16.msra.mxu0 0
        %268 = vmatprep.subr.bf16.mxu0 0
        %269 = vmatpush2.bf16.msra.mxu0 0
        %270 = vmatprep.subr.bf16.mxu0 0
        %271 = vmatpush2.bf16.msra.mxu0 0
        %272 = vmatprep.subr.bf16.mxu0 0
        %273 = vmatpush2.bf16.msra.mxu0 0
        %274 = vmatprep.subr.bf16.mxu0 0
        %275 = vmatpush2.bf16.msra.mxu0 0
        %276 = vmatprep.subr.bf16.mxu0 0
        %277 = vmatpush2.bf16.msra.mxu0 0
        %278 = vmatprep.mubr.bf16.mxu0 0
        %279 = vmatmul.mubr.bf16.gmra.mxu0 %v244
        %v280 = vpop.f32.mrf.mxu0
        %v281 = vadd.f32 0.0, %v280
        %v282 = vpop.f32.mrf.mxu0
        %v283 = vpop.f32.mrf.mxu0
        %v284 = vpop.f32.mrf.mxu0
        %285 = vdwg.mxu0
        %v287 = vsel %vm242, %v217, 0
        %289 = vmatprep.subr.bf16.mxu0 0
        %290 = vmatpush1.bf16.msra.mxu0 0
        %291 = vmatprep.subr.bf16.mxu0 0
        %292 = vmatpush1.bf16.msra.mxu0 0
        %293 = vmatprep.subr.bf16.mxu0 0
        %294 = vmatpush1.bf16.msra.mxu0 0
        %295 = vmatprep.subr.bf16.mxu0 0
        %296 = vmatpush1.bf16.msra.mxu0 0
        %297 = vmatprep.subr.bf16.mxu0 0
        %298 = vmatpush1.bf16.msra.mxu0 0
        %299 = vmatprep.subr.bf16.mxu0 0
        %300 = vmatpush1.bf16.msra.mxu0 %v238
        %301 = vmatprep.subr.bf16.mxu0 0
        %302 = vmatpush1.bf16.msra.mxu0 %v237
        %303 = vmatprep.subr.bf16.mxu0 0
        %304 = vmatpush1.bf16.msra.mxu0 %v236
        %305 = vmatprep.subr.bf16.mxu0 0
        %306 = vmatpush2.bf16.msra.mxu0 0
        %307 = vmatprep.subr.bf16.mxu0 0
        %308 = vmatpush2.bf16.msra.mxu0 0
        %309 = vmatprep.subr.bf16.mxu0 0
        %310 = vmatpush2.bf16.msra.mxu0 0
        %311 = vmatprep.subr.bf16.mxu0 0
        %312 = vmatpush2.bf16.msra.mxu0 0
        %313 = vmatprep.subr.bf16.mxu0 0
        %314 = vmatpush2.bf16.msra.mxu0 0
        %315 = vmatprep.subr.bf16.mxu0 0
        %316 = vmatpush2.bf16.msra.mxu0 0
        %317 = vmatprep.subr.bf16.mxu0 0
        %318 = vmatpush2.bf16.msra.mxu0 0
        %319 = vmatprep.subr.bf16.mxu0 0
        %320 = vmatpush2.bf16.msra.mxu0 0
        %321 = vmatprep.mubr.bf16.mxu0 0
        %322 = vmatmul.mubr.bf16.gmra.mxu0 %v287
        %v323 = vpop.f32.mrf.mxu0
        %v324 = vadd.f32 %v281, %v323
        %v325 = vpop.f32.mrf.mxu0
        %v326 = vpop.f32.mrf.mxu0
        %v327 = vpop.f32.mrf.mxu0
        %328 = vdwg.mxu0
        %v330 = vsel %vm242, %v223, 0
        %332 = vmatprep.subr.bf16.mxu0 0
        %333 = vmatpush1.bf16.msra.mxu0 0
        %334 = vmatprep.subr.bf16.mxu0 0
        %335 = vmatpush1.bf16.msra.mxu0 0
        %336 = vmatprep.subr.bf16.mxu0 0
        %337 = vmatpush1.bf16.msra.mxu0 0
        %338 = vmatprep.subr.bf16.mxu0 0
        %339 = vmatpush1.bf16.msra.mxu0 0
        %340 = vmatprep.subr.bf16.mxu0 0
        %341 = vmatpush1.bf16.msra.mxu0 0
        %342 = vmatprep.subr.bf16.mxu0 0
        %343 = vmatpush1.bf16.msra.mxu0 %v238
        %344 = vmatprep.subr.bf16.mxu0 0
        %345 = vmatpush1.bf16.msra.mxu0 %v237
        %346 = vmatprep.subr.bf16.mxu0 0
        %347 = vmatpush1.bf16.msra.mxu0 %v236
        %348 = vmatprep.subr.bf16.mxu0 0
        %349 = vmatpush2.bf16.msra.mxu0 0
        %350 = vmatprep.subr.bf16.mxu0 0
        %351 = vmatpush2.bf16.msra.mxu0 0
        %352 = vmatprep.subr.bf16.mxu0 0
        %353 = vmatpush2.bf16.msra.mxu0 0
        %354 = vmatprep.subr.bf16.mxu0 0
        %355 = vmatpush2.bf16.msra.mxu0 0
        %356 = vmatprep.subr.bf16.mxu0 0
        %357 = vmatpush2.bf16.msra.mxu0 0
        %358 = vmatprep.subr.bf16.mxu0 0
        %359 = vmatpush2.bf16.msra.mxu0 0
        %360 = vmatprep.subr.bf16.mxu0 0
        %361 = vmatpush2.bf16.msra.mxu0 0
        %362 = vmatprep.subr.bf16.mxu0 0
        %363 = vmatpush2.bf16.msra.mxu0 0
        %364 = vmatprep.mubr.bf16.mxu0 0
        %365 = vmatmul.mubr.bf16.gmra.mxu0 %v330
        %v366 = vpop.f32.mrf.mxu0
        %v367 = vadd.f32 0.0, %v366
        %v368 = vpop.f32.mrf.mxu0
        %v369 = vpop.f32.mrf.mxu0
        %v370 = vpop.f32.mrf.mxu0
        %371 = vdwg.mxu0
        %v372 = vadd.f32 %v324, %v367
        %vm373 = vcmask 64512
        %374 = vst.msk [vmem:[%s189] sm:$0xff] %vm373, %v372
        %376 = vrot.lane.b32.xlu0 %v372, 120
        %v377 = vpop.permute.xlu0 %376
        %379 = vst.msk [vmem:[%s196] sm:$0xff] %vm373, %v377
        %s380 = sand.u32 %s92, 1
        %s381 = scalar_lea.sflag [#allocation3], %s380
        %s382 = sand.u32 %s92, 1
        %s383 = smul.addr %s382, 8
        %s384 = scalar_lea.vmem [#allocation2], %s383
        %s385 = sand.u32 %s120, 1
        %s386 = scalar_lea.sflag [#allocation5], %s385
        %s387 = sand.u32 %s120, 1
        %s388 = smul.addr %s387, 8
        %s389 = scalar_lea.vmem [#allocation4], %s388
        // Predicated region
        $region29: #{tpu_custom_call.1} parent=27 // pred_check
          %p390 = pneg %p102
        $region30: #{tpu_custom_call.1} parent=27 // pred_check_branch
          %392 = sbr.rel (%p390) target = $region32
        $region31: #{tpu_custom_call.1} parent=27 // pred_region
          %s394 = ssub.s32 128, 128
          %395 = vsyncadd %s381, %s394
          %s396 = sadd.s32 %s26, %s25
          %s397 = smul.addr %s396, 128
          %s398 = scalar_lea.hbm %s2, %s397
          %s400 = sshll.u32 %s384, 4
          %s401 = int_to_ptr.vmem [resolvable:$true] %s400
          %403 = dma.vmem_to_hbm [thread:$0]  %s401, 128, %s398, %s381
        $region32: #{tpu_custom_call.1} parent=27 // pred_fallthru
          _
        // Predicated region
        $region33: #{tpu_custom_call.1} parent=27 // pred_check
          %p404 = pneg %p130
        $region34: #{tpu_custom_call.1} parent=27 // pred_check_branch
          %406 = sbr.rel (%p404) target = $region36
        $region35: #{tpu_custom_call.1} parent=27 // pred_region
          %s408 = ssub.s32 128, 128
          %409 = vsyncadd %s386, %s408
          %s410 = sadd.s32 %s26, %s25
          %s411 = smul.addr %s410, 128
          %s412 = scalar_lea.hbm %s3, %s411
          %s414 = sshll.u32 %s389, 4
          %s415 = int_to_ptr.vmem [resolvable:$true] %s414
          %417 = dma.vmem_to_hbm [thread:$0]  %s415, 128, %s412, %s386
        $region36: #{tpu_custom_call.1} parent=27 // pred_fallthru
          _
      $region28: #{tpu_custom_call.1} parent=5 // pred_fallthru
        _
      %p418 = scmp.le.s32.totalorder 2, %s16
      // Predicated region
      $region37: #{tpu_custom_call.1} parent=5 // pred_check
        %p419 = pneg %p418
      $region38: #{tpu_custom_call.1} parent=5 // pred_check_branch
        %421 = sbr.rel (%p419) target = $region40
      $region39: #{tpu_custom_call.1} parent=5 // pred_region
        %s422 = ssub.s32 %s16, 2
        // Predicated region
        $region41: #{tpu_custom_call.1} parent=39 // pred_check
          %p423 = pneg %p108
        $region42: #{tpu_custom_call.1} parent=39 // pred_check_branch
          %425 = sbr.rel (%p423) target = $region44
        $region43: #{tpu_custom_call.1} parent=39 // pred_region
          %s426 = sand.u32 %s93, 1
          %s427 = scalar_lea.sflag [#allocation3], %s426
          %s428 = sand.u32 %s93, 1
          %s429 = smul.addr %s428, 8
          %s430 = scalar_lea.vmem [#allocation2], %s429
          %431 = dma.done %s427, 128
        $region44: #{tpu_custom_call.1} parent=39 // pred_fallthru
          _
        // Predicated region
        $region45: #{tpu_custom_call.1} parent=39 // pred_check
          %p432 = pneg %p136
        $region46: #{tpu_custom_call.1} parent=39 // pred_check_branch
          %434 = sbr.rel (%p432) target = $region48
        $region47: #{tpu_custom_call.1} parent=39 // pred_region
          %s435 = sand.u32 %s121, 1
          %s436 = scalar_lea.sflag [#allocation5], %s435
          %s437 = sand.u32 %s121, 1
          %s438 = smul.addr %s437, 8
          %s439 = scalar_lea.vmem [#allocation4], %s438
          %440 = dma.done %s436, 128
        $region48: #{tpu_custom_call.1} parent=39 // pred_fallthru
          _
      $region40: #{tpu_custom_call.1} parent=5 // pred_fallthru
        _
    $region6: #{tpu_custom_call.1} parent=1 // loop_footer
      %s20 = sadd.s32 1, %s16
    $region7: #{tpu_custom_call.1} parent=1 // loop_footer_branch
      %15 = sbr.rel target = $region3
    $region8: #{tpu_custom_call.1} parent=1 // loop_exit
      _
    %441 = vsyncpa [#allocation3], 1
    %s442 = scalar_lea.sflag [#allocation3], 1
    %443 = vsyncpa %s442, 1
    %444 = vsyncpa [#allocation5], 1
    %s445 = scalar_lea.sflag [#allocation5], 1
    %446 = vsyncpa %s445, 1

</llo_original>
